<compile_context>
chip_gen: v5e
topology: v5e:2x2
jax: 0.10.0
libtpu: 0.0.40
codegen_flags: <defaults>
</compile_context>

<pallas_src>
import jax
import jax.numpy as jnp
from jax.experimental import pallas as pl
from jax.experimental.pallas import tpu as pltpu


def _normalization_kernel(x_ref, p_ref, o_ref):
    # x_ref / o_ref : (r_blk, hw_blk) tile of the flattened (N*C, H*W) view.
    # p_ref         : (r_blk, 2) float32 per-row [scale, bias], broadcast over
    #                 the lane axis.
    # Compute in f32 (kernel is HBM-bound; upcast cost is hidden).
    x = x_ref[...].astype(jnp.float32)
    scale = p_ref[:, 0:1]
    bias = p_ref[:, 1:2]
    o_ref[...] = (x * scale + bias).astype(o_ref.dtype)


def _round_down(v, m):
    return (v // m) * m


def _dimension_semantics():
    # v7x has 2 TensorCores per chip and only CORE_PARALLEL actually shards a
    # grid axis across them; on single-TC v5e/v6e use plain PARALLEL.
    kind = ""
    try:
        kind = jax.devices()[0].device_kind.lower()
    except Exception:  # defensive: no device info at trace time
        pass
    row_sem = pltpu.CORE_PARALLEL if "v7" in kind else pltpu.PARALLEL
    return (row_sem, pltpu.PARALLEL)


def normalization(x, mean, std, *, target_tile_bytes=2 << 20, donate_x=False):
    """(x - mean[:, None, None]) / std[:, None, None] for NCHW x."""
    N, C, H, W = x.shape
    NC, HW = N * C, H * W
    elem = jnp.dtype(x.dtype).itemsize

    # Affine rewrite: y = x*scale + bias == (x - mean)/std (tiny (C,) math,
    # done once outside the kernel, kept in f32). Packed as (NC, 2).
    scale = 1.0 / jnp.asarray(std, dtype=jnp.float32).reshape(C)
    bias = -jnp.asarray(mean, dtype=jnp.float32).reshape(C) * scale
    params = jnp.tile(jnp.stack([scale, bias], axis=-1), (N, 1))  # (NC, 2)

    # Lane-dense 2D view (free reshape for contiguous NCHW).
    x2 = x.reshape(NC, HW)

    # ---- tile sizing -------------------------------------------------------
    # Block dims only need to be multiples of (8, 128) OR equal the full array
    # extent; partial edge blocks are handled by Pallas. Never fall back to a
    # full-extent slab that could blow past VMEM.
    lane_cap = max(128, _round_down(target_tile_bytes // (8 * elem), 128))
    if HW <= 128:
        hw_blk = HW                                      # tiny: full extent
    elif HW % 128 == 0:
        hw_blk = min(HW, lane_cap)                       # multiple of 128
    else:
        hw_blk = min(_round_down(HW, 128), lane_cap)     # mult of 128 + edge blk

    r_target = max(8, _round_down(target_tile_bytes // (hw_blk * elem), 8))
    r_blk = NC if NC <= r_target else r_target           # full extent or mult of 8

    grid = (pl.cdiv(NC, r_blk), pl.cdiv(HW, hw_blk))

    x_spec = pl.BlockSpec((r_blk, hw_blk), lambda i, j: (i, j))
    p_spec = pl.BlockSpec((r_blk, 2), lambda i, j: (i, 0))

    # ---- VMEM budget (worst case v7x: 64 MiB physical, 32 MiB default) -----
    x_tile_bytes = r_blk * hw_blk * elem
    p_tile_bytes = r_blk * 128 * 4                       # lane-padded f32 params
    buffered = 4 * x_tile_bytes + 2 * p_tile_bytes       # 2x in + 2x out + 2x p
    vmem_limit = int(min(max(int(1.5 * buffered), 16 << 20), 48 << 20))

    call = pl.pallas_call(
        _normalization_kernel,
        out_shape=jax.ShapeDtypeStruct((NC, HW), x.dtype),
        grid_spec=pl.GridSpec(
            grid=grid,
            in_specs=[x_spec, p_spec],
            out_specs=x_spec,
        ),
        compiler_params=pltpu.CompilerParams(
            dimension_semantics=_dimension_semantics(),
            vmem_limit_bytes=vmem_limit,
        ),
        cost_estimate=pl.CostEstimate(
            flops=2 * NC * HW,
            bytes_accessed=2 * NC * HW * elem + NC * 2 * 4,
            transcendentals=0,
        ),
        input_output_aliases=({0: 0} if donate_x else {}),
    )
    out2 = call(x2, params)
    return out2.reshape(N, C, H, W)


if __name__ == "__main__":
    N, C, H, W = 2, 4, 16, 16

    key = jax.random.PRNGKey(0)
    x = jax.random.normal(key, (N, C, H, W), dtype=jnp.float32)

    # Deterministic per-channel normalization parameters (module __init__ args).
    mean = jnp.array([0.485, 0.456, 0.406, 0.5], dtype=jnp.float32)
    std = jnp.array([0.229, 0.224, 0.225, 0.25], dtype=jnp.float32)

    out = jax.block_until_ready(normalization(x, mean, std))

    # Reference check (pure JAX, same broadcast as torch's (C,1,1) view).
    ref = (x - mean[:, None, None]) / std[:, None, None]
    assert out.shape == x.shape and out.dtype == x.dtype
    # Affine (x*scale + bias) vs (x-mean)/std differ only by f32 rounding.
    assert jnp.allclose(out, ref, rtol=1e-5, atol=1e-5)

    print("KERNEL_OK")
</pallas_src>

<mosaic_0001>
module attributes {stable_mosaic.version = 11 : i64} {
  func.func @_normalization_kernel(%arg0: i32, %arg1: i32, %arg2: memref<8x256xf32, #tpu.memory_space<vmem>>, %arg3: memref<8x2xf32, #tpu.memory_space<vmem>>, %arg4: memref<8x256xf32, #tpu.memory_space<vmem>>) attributes {dimension_semantics = [#tpu.dimension_semantics<parallel>, #tpu.dimension_semantics<parallel>], iteration_bounds = array<i64: 1, 1>, scalar_prefetch = 0 : i64, scratch_operands = 0 : i64, tpu.core_type = #tpu.core_type<tc>, window_params = [{transform_indices = @transform_0, window_bounds = array<i64: 8, 256>}, {transform_indices = @transform_1, window_bounds = array<i64: 8, 2>}, {transform_indices = @transform_2, window_bounds = array<i64: 8, 256>}]} {
    %c0 = arith.constant 0 : index
    %c0_0 = arith.constant 0 : index
    %0 = vector.load %arg2[%c0, %c0_0] : memref<8x256xf32, #tpu.memory_space<vmem>>, vector<8x256xf32>
    %c0_1 = arith.constant 0 : index
    %c0_2 = arith.constant 0 : index
    %1 = vector.load %arg3[%c0_1, %c0_2] : memref<8x2xf32, #tpu.memory_space<vmem>>, vector<8x1xf32>
    %c0_3 = arith.constant 0 : index
    %c1 = arith.constant 1 : index
    %2 = vector.load %arg3[%c0_3, %c1] : memref<8x2xf32, #tpu.memory_space<vmem>>, vector<8x1xf32>
    %3 = vector.broadcast %1 : vector<8x1xf32> to vector<8x256xf32>
    %4 = arith.mulf %0, %3 : vector<8x256xf32>
    %5 = vector.broadcast %2 : vector<8x1xf32> to vector<8x256xf32>
    %6 = arith.addf %4, %5 : vector<8x256xf32>
    %c0_4 = arith.constant 0 : index
    %c0_5 = arith.constant 0 : index
    %7 = vector.load %arg4[%c0_4, %c0_5] : memref<8x256xf32, #tpu.memory_space<vmem>>, vector<8x256xf32>
    tpu.vector_store %arg4[%c0_4, %c0_5], %6 {strides = array<i32>} : memref<8x256xf32, #tpu.memory_space<vmem>>, vector<8x256xf32>,
    return
  }
  func.func @transform_0(%arg0: i32, %arg1: i32) -> (i32, i32) {
    %c0_i32 = arith.constant 0 : i32
    return %arg0, %arg1 : i32, i32
  }
  func.func @transform_1(%arg0: i32, %arg1: i32) -> (i32, i32) {
    %c0_i32 = arith.constant 0 : i32
    %c0_i32_0 = arith.constant 0 : i32
    return %arg0, %c0_i32 : i32, i32
  }
  func.func @transform_2(%arg0: i32, %arg1: i32) -> (i32, i32) {
    %c0_i32 = arith.constant 0 : i32
    return %arg0, %arg1 : i32, i32
  }
}

</mosaic_0001>

<llo_original>
// kernel: tpu_custom_call.1
$region0: #{tpu_custom_call.1}
  #allocation0 [shape = 'u32[]', space=smem, size = 0x4, offset = 0x4, fixed_abs, tag = 'smem constant byte address 0x4 - core index']
  #allocation1 [shape = 'u32[72,128]{1,0:T(1,128)}', space=vmem, size = 0x9000, scoped, tag = 'internal scratch']
  %s0 = inlined_call_operand.hbm [shape: f32[8,256], index: 0, kind: input, shape index: {}]
  %s1 = inlined_call_operand.vmem [shape: f32[8,2], index: 1, kind: input, shape index: {}]
  %s2 = inlined_call_operand.hbm [shape: f32[8,256], index: 2, kind: output, shape index: {}]
  %s3 = sld [smem:[#allocation0]]
  $region22: #{tpu_custom_call.1} parent=0
    _
  %s5 = ssub.s32 1, %s3
  %s6 = scalar_select 0, %s5, %s3
  $region1: #{tpu_custom_call.1} parent=0
    #allocation2 [shape = 'u8[8192]{0}', space=vmem, size = 0x2000, scoped, tag = 'input window, operand 0, single buffered']
    #allocation3 [shape = 's32[1]{0}', space=sflag, size = 0x4, scoped, tag = 'scoped memory for tpu_custom_call.1']
    #allocation4 [shape = 's32[1]{0}', space=sflag, size = 0x4, scoped, tag = 'scoped memory for tpu_custom_call.1']
    #allocation5 [shape = 'u8[8192]{0}', space=vmem, size = 0x2000, scoped, tag = 'output window, operand 0, single buffered']
    %7 = vsyncpa [#allocation3], 0
    %8 = vsyncpa [#allocation4], 0
    // Predicated region
    $region2: #{tpu_custom_call.1} parent=1 // pred_check
      _
    $region3: #{tpu_custom_call.1} parent=1 // pred_check_branch
      %10 = sbr.rel (0) target = $region5
    $region4: #{tpu_custom_call.1} parent=1 // pred_region
      %12 = vsyncadd [#allocation3], 0
      %s14 = sshll.u32 %s0, 4
      %s15 = int_to_ptr.hbm [resolvable:$true] %s14
      %s16 = sshll.u32 [#allocation2], 4
      %s17 = int_to_ptr.vmem [resolvable:$true] %s16
      %19 = dma.hbm_to_vmem [thread:$0]  %s15, 256, %s17, [#allocation3]
    $region5: #{tpu_custom_call.1} parent=1 // pred_fallthru
      _
    // Predicated region
    $region6: #{tpu_custom_call.1} parent=1 // pred_check
      _
    $region7: #{tpu_custom_call.1} parent=1 // pred_check_branch
      %21 = sbr.rel (0) target = $region9
    $region8: #{tpu_custom_call.1} parent=1 // pred_region
      _
    $region9: #{tpu_custom_call.1} parent=1 // pred_fallthru
      _
    // Predicated region
    $region10: #{tpu_custom_call.1} parent=1 // pred_check
      _
    $region11: #{tpu_custom_call.1} parent=1 // pred_check_branch
      %23 = sbr.rel (0) target = $region13
    $region12: #{tpu_custom_call.1} parent=1 // pred_region
      %25 = dma.done [#allocation3], 256
    $region13: #{tpu_custom_call.1} parent=1 // pred_fallthru
      _
    %v26 = vld [vmem:[#allocation2] sm:$0xff]
    %v27 = vld [vmem:[#allocation2 + $0x8] sm:$0xff]
    %v28 = vld [vmem:[%s1] sm:$0xff]
    %30 = vset.pattern.permute.xlu0 0
    %31 = vperm.xlu0 %30, %v28
    %v32 = vpop.permute.xlu0 %31
    %v34 = vmul.f32 %v26, %v32
    %v35 = vmul.f32 %v27, %v32
    %36 = vset.pattern.permute.xlu0 1
    %37 = vperm.xlu0 %36, %v28
    %v38 = vpop.permute.xlu0 %37
    %v40 = vadd.f32 %v34, %v38
    %v41 = vadd.f32 %v35, %v38
    %42 = vst [vmem:[#allocation5] sm:$0xff] %v40
    %43 = vst [vmem:[#allocation5 + $0x8] sm:$0xff] %v41
    // Predicated region
    $region14: #{tpu_custom_call.1} parent=1 // pred_check
      _
    $region15: #{tpu_custom_call.1} parent=1 // pred_check_branch
      %45 = sbr.rel (0) target = $region17
    $region16: #{tpu_custom_call.1} parent=1 // pred_region
      %47 = vsyncadd [#allocation4], 0
      %s49 = sshll.u32 [#allocation5], 4
      %s50 = int_to_ptr.vmem [resolvable:$true] %s49
      %s51 = sshll.u32 %s2, 4
      %s52 = int_to_ptr.hbm [resolvable:$true] %s51
      %54 = dma.vmem_to_hbm [thread:$0]  %s50, 256, %s52, [#allocation4]
    $region17: #{tpu_custom_call.1} parent=1 // pred_fallthru
      _
    // Predicated region
    $region18: #{tpu_custom_call.1} parent=1 // pred_check
      _
    $region19: #{tpu_custom_call.1} parent=1 // pred_check_branch
      %56 = sbr.rel (0) target = $region21
    $region20: #{tpu_custom_call.1} parent=1 // pred_region
      %58 = dma.done [#allocation4], 256
    $region21: #{tpu_custom_call.1} parent=1 // pred_fallthru
      _
    %59 = vsyncpa [#allocation3], 1
    %60 = vsyncpa [#allocation4], 1

</llo_original>
